<compile_context>
chip_gen: v6e
topology: v6e:2x2x1
jax: 0.10.0
libtpu: 0.0.40
codegen_flags: <defaults>
</compile_context>

<pallas_src>
import functools

import jax
import jax.numpy as jnp
from jax.experimental import pallas as pl
from jax.experimental.pallas import tpu as pltpu


def _round_up(a, b):
    return (a + b - 1) // b * b


def _transition_kernel(x_ref, scale_ref, bias_ref, w_ref, o_ref, *,
                       k_starts, k_chunk, matmul_dtype):
    # x_ref:     (tile, K)     flattened 2x2 window x channels (window-pixel-major)
    # scale_ref: (1, K)        folded BN scale (compute dtype)
    # bias_ref:  (1, K)        folded BN bias  (compute dtype)
    # w_ref:     (K, CoutP)    stacked 1x1-conv weight * 0.25 (pool folded in)
    # o_ref:     (tile, CoutP)
    K = x_ref.shape[1]
    acc = jnp.zeros(o_ref.shape, jnp.float32)
    for start in k_starts:                       # static, unrolled K-chunk loop
        size = min(k_chunk, K - start)
        x = x_ref[:, start:start + size]
        s = scale_ref[:, start:start + size]
        b = bias_ref[:, start:start + size]
        y = jnp.maximum(x * s + b, 0.0)          # BN + ReLU (VPU)
        acc = acc + jnp.dot(                     # conv + pool (MXU, f32 accumulate)
            y.astype(matmul_dtype), w_ref[start:start + size, :],
            preferred_element_type=jnp.float32)
    o_ref[...] = acc.astype(o_ref.dtype)


def _const_spec(shape):
    # Constant operand: index_map never changes, so a single buffer suffices.
    idx = lambda i: (0, 0)
    try:
        return pl.BlockSpec(shape, idx, pipeline_mode=pl.Buffered(1))
    except Exception:  # older jax without pipeline_mode: fall back to default buffering
        return pl.BlockSpec(shape, idx)


def transition_forward(x_nchw, gamma, beta, run_mean, run_var, conv_w,
                       eps=1e-5, matmul_dtype=jnp.bfloat16, k_chunk=512):
    """Pallas implementation of Transition.forward (eval-mode BN).

    x_nchw : (N, Cin, H, W)
    conv_w : (Cout, Cin, 1, 1)
    returns: (N, Cout, H//2, W//2) in NCHW, matching PyTorch.
    """
    N, C, H, W = x_nchw.shape
    Cout = conv_w.shape[0]
    assert H % 2 == 0 and W % 2 == 0
    dtype = x_nchw.dtype
    compute_dtype = jnp.bfloat16 if dtype == jnp.bfloat16 else jnp.float32

    # Fold BN (eval mode) into per-channel scale/bias (f32 math).
    inv_std = 1.0 / jnp.sqrt(run_var.astype(jnp.float32) + eps)
    scale_c = gamma.astype(jnp.float32) * inv_std                         # (C,)
    bias_c = beta.astype(jnp.float32) - run_mean.astype(jnp.float32) * scale_c

    H2, W2 = H // 2, W // 2
    npix = N * H2 * W2
    K = 4 * C
    CoutP = _round_up(Cout, 128)

    # NCHW -> (npix, 4*C): single fused transpose (window pixel p = 2*dh+dw,
    # channels fastest within each pixel). No padding of the activation.
    x = x_nchw.reshape(N, C, H2, 2, W2, 2)
    x = jnp.transpose(x, (0, 2, 4, 3, 5, 1)).reshape(npix, K)

    # Stack the 1x1-conv weight over the 4 window pixels, fold in the 0.25 pool
    # factor, pad only the (tiny) Cout dim for a lane-dense output.
    wt = conv_w.reshape(Cout, C).T.astype(jnp.float32)                    # (C, Cout)
    w4 = jnp.tile(wt * 0.25, (4, 1))                                      # (K, Cout)
    w4 = jnp.pad(w4, ((0, 0), (0, CoutP - Cout))).astype(matmul_dtype)    # (K, CoutP)

    scale_k = jnp.tile(scale_c, 4)[None, :].astype(compute_dtype)         # (1, K)
    bias_k = jnp.tile(bias_c, 4)[None, :].astype(compute_dtype)           # (1, K)

    # ---- VMEM budget / row-tile selection (generation-aware) ----
    try:
        vmem_cap = int(pltpu.get_tpu_info().vmem_capacity_bytes)
    except Exception:
        vmem_cap = 64 * 1024 * 1024                                       # v7x worst case
    vmem_limit = (vmem_cap * 7) // 8
    budget = (vmem_cap * 5) // 8                                          # sizing target w/ headroom

    in_it = jnp.dtype(dtype).itemsize
    out_it = jnp.dtype(dtype).itemsize
    mm_it = jnp.dtype(matmul_dtype).itemsize
    cp_it = jnp.dtype(compute_dtype).itemsize
    kc = min(k_chunk, K)

    fixed = K * CoutP * mm_it + 2 * K * cp_it       # single-buffered weight + scale/bias
    per_row = (2 * K * in_it                        # x rows (double-buffered)
               + 2 * CoutP * out_it                 # out rows (double-buffered)
               + CoutP * 4                          # f32 accumulator
               + kc * (cp_it + mm_it))              # per-chunk BN/ReLU + cast temporaries
    tile = max(8, (budget - fixed) // per_row)
    tile = min(tile, 2048, _round_up(npix, 8))
    tile = (tile // 256) * 256 if tile >= 256 else (tile // 8) * 8
    tile = max(tile, 8)

    grid = (pl.cdiv(npix, tile),)                   # ragged last tile handled by masking
    k_starts = tuple(range(0, K, kc))

    kernel = functools.partial(_transition_kernel, k_starts=k_starts,
                               k_chunk=kc, matmul_dtype=matmul_dtype)

    cost = pl.CostEstimate(
        flops=2 * npix * K * Cout,
        transcendentals=0,
        bytes_accessed=npix * K * in_it + npix * CoutP * out_it + K * CoutP * mm_it)

    out_flat = pl.pallas_call(
        kernel,
        out_shape=jax.ShapeDtypeStruct((npix, CoutP), dtype),
        grid=grid,
        in_specs=[
            pl.BlockSpec((tile, K), lambda i: (i, 0)),
            _const_spec((1, K)),
            _const_spec((1, K)),
            _const_spec((K, CoutP)),
        ],
        out_specs=pl.BlockSpec((tile, CoutP), lambda i: (i, 0)),
        compiler_params=pltpu.CompilerParams(
            dimension_semantics=("parallel",),
            vmem_limit_bytes=int(vmem_limit)),
        cost_estimate=cost,
    )(x, scale_k, bias_k, w4)

    # Strip the Cout pad, back to NCHW (fused with the required output transpose).
    out = out_flat[:, :Cout].reshape(N, H2, W2, Cout)
    return jnp.transpose(out, (0, 3, 1, 2)).astype(dtype)


def _reference(x_nchw, gamma, beta, run_mean, run_var, conv_w, eps=1e-5):
    # Pure-JAX reference mirroring PyTorch op order: BN -> ReLU -> conv1x1 -> avgpool(2)
    xn = (x_nchw - run_mean[None, :, None, None]) / jnp.sqrt(run_var[None, :, None, None] + eps)
    xn = xn * gamma[None, :, None, None] + beta[None, :, None, None]
    y = jnp.maximum(xn, 0.0)
    conv = jnp.einsum('nchw,oc->nohw', y, conv_w.reshape(conv_w.shape[0], conv_w.shape[1]))
    N, Co, H, W = conv.shape
    return conv.reshape(N, Co, H // 2, 2, W // 2, 2).mean(axis=(3, 5))


if __name__ == "__main__":
    key = jax.random.PRNGKey(0)
    k1, k2, k3, k4, k5, k6 = jax.random.split(key, 6)

    N, Cin, H, W = 2, 4, 16, 16
    Cout = 8

    x = jax.random.normal(k1, (N, Cin, H, W), dtype=jnp.float32)
    gamma = jax.random.normal(k2, (Cin,), dtype=jnp.float32) * 0.1 + 1.0
    beta = jax.random.normal(k3, (Cin,), dtype=jnp.float32) * 0.1
    run_mean = jax.random.normal(k4, (Cin,), dtype=jnp.float32) * 0.1
    run_var = jax.random.uniform(k5, (Cin,), dtype=jnp.float32, minval=0.5, maxval=1.5)
    conv_w = jax.random.normal(k6, (Cout, Cin, 1, 1), dtype=jnp.float32) * 0.1

    ref = _reference(x, gamma, beta, run_mean, run_var, conv_w)

    # Default fast path: bf16 MXU with f32 accumulation (all generations).
    out_bf16 = jax.block_until_ready(
        transition_forward(x, gamma, beta, run_mean, run_var, conv_w))
    assert out_bf16.shape == (N, Cout, H // 2, W // 2), out_bf16.shape
    assert jnp.allclose(out_bf16, ref, rtol=3e-2, atol=3e-2), \
        float(jnp.max(jnp.abs(out_bf16 - ref)))

    # Full-precision path for a tight numerical check.
    out_f32 = jax.block_until_ready(
        transition_forward(x, gamma, beta, run_mean, run_var, conv_w,
                           matmul_dtype=jnp.float32))
    assert jnp.allclose(out_f32, ref, rtol=1e-5, atol=1e-5), \
        float(jnp.max(jnp.abs(out_f32 - ref)))

    print("KERNEL_OK")
</pallas_src>

<mosaic_0001>
module attributes {stable_mosaic.version = 11 : i64} {
  func.func @_transition_kernel(%arg0: i32, %arg1: memref<128x16xf32, #tpu.memory_space<vmem>>, %arg2: memref<1x16xf32, #tpu.memory_space<vmem>>, %arg3: memref<1x16xf32, #tpu.memory_space<vmem>>, %arg4: memref<16x128xbf16, #tpu.memory_space<vmem>>, %arg5: memref<128x128xf32, #tpu.memory_space<vmem>>) attributes {dimension_semantics = [#tpu.dimension_semantics<parallel>], iteration_bounds = array<i64: 1>, scalar_prefetch = 0 : i64, scratch_operands = 0 : i64, tpu.core_type = #tpu.core_type<tc>, window_params = [{transform_indices = @transform_0, window_bounds = array<i64: 128, 16>}, {pipeline_mode = #tpu.pipeline_mode<synchronous>, transform_indices = @transform_1, window_bounds = array<i64: 1, 16>}, {pipeline_mode = #tpu.pipeline_mode<synchronous>, transform_indices = @transform_2, window_bounds = array<i64: 1, 16>}, {pipeline_mode = #tpu.pipeline_mode<synchronous>, transform_indices = @transform_3, window_bounds = array<i64: 16, 128>}, {transform_indices = @transform_4, window_bounds = array<i64: 128, 128>}]} {
    %cst = arith.constant 0.000000e+00 : f32
    %0 = vector.broadcast %cst : f32 to vector<128x128xf32>
    %c0 = arith.constant 0 : index
    %c0_0 = arith.constant 0 : index
    %1 = vector.load %arg1[%c0, %c0_0] : memref<128x16xf32, #tpu.memory_space<vmem>>, vector<128x16xf32>
    %c0_1 = arith.constant 0 : index
    %c0_2 = arith.constant 0 : index
    %2 = vector.load %arg2[%c0_1, %c0_2] : memref<1x16xf32, #tpu.memory_space<vmem>>, vector<1x16xf32>
    %c0_3 = arith.constant 0 : index
    %c0_4 = arith.constant 0 : index
    %3 = vector.load %arg3[%c0_3, %c0_4] : memref<1x16xf32, #tpu.memory_space<vmem>>, vector<1x16xf32>
    %4 = vector.broadcast %2 : vector<1x16xf32> to vector<128x16xf32>
    %5 = arith.mulf %1, %4 : vector<128x16xf32>
    %6 = vector.broadcast %3 : vector<1x16xf32> to vector<128x16xf32>
    %7 = arith.addf %5, %6 : vector<128x16xf32>
    %cst_5 = arith.constant 0.000000e+00 : f32
    %8 = vector.broadcast %cst_5 : f32 to vector<128x16xf32>
    %9 = arith.maximumf %7, %8 : vector<128x16xf32>
    %10 = arith.truncf %9 : vector<128x16xf32> to vector<128x16xbf16>
    %c0_6 = arith.constant 0 : index
    %c0_7 = arith.constant 0 : index
    %11 = vector.load %arg4[%c0_6, %c0_7] : memref<16x128xbf16, #tpu.memory_space<vmem>>, vector<16x128xbf16>
    %cst_8 = arith.constant dense<0.000000e+00> : vector<128x128xf32>
    %12 = tpu.matmul %10, %11, %cst_8 {dimension_numbers = #tpu.dot_dimension_numbers<[1], [0], [0], [1], [0, 0, 1, 1], [], []>} : vector<128x16xbf16>, vector<16x128xbf16>, vector<128x128xf32> -> vector<128x128xf32>
    %13 = arith.addf %0, %12 : vector<128x128xf32>
    %c0_9 = arith.constant 0 : index
    %c0_10 = arith.constant 0 : index
    %14 = vector.load %arg5[%c0_9, %c0_10] : memref<128x128xf32, #tpu.memory_space<vmem>>, vector<128x128xf32>
    tpu.vector_store %arg5[%c0_9, %c0_10], %13 {strides = array<i32>} : memref<128x128xf32, #tpu.memory_space<vmem>>, vector<128x128xf32>,
    return
  }
  func.func @transform_0(%arg0: i32) -> (i32, i32) {
    %c0_i32 = arith.constant 0 : i32
    %c0_i32_0 = arith.constant 0 : i32
    return %arg0, %c0_i32 : i32, i32
  }
  func.func @transform_1(%arg0: i32) -> (i32, i32) {
    %c0_i32 = arith.constant 0 : i32
    %c0_i32_0 = arith.constant 0 : i32
    %c0_i32_1 = arith.constant 0 : i32
    return %c0_i32, %c0_i32_0 : i32, i32
  }
  func.func @transform_2(%arg0: i32) -> (i32, i32) {
    %c0_i32 = arith.constant 0 : i32
    %c0_i32_0 = arith.constant 0 : i32
    %c0_i32_1 = arith.constant 0 : i32
    return %c0_i32, %c0_i32_0 : i32, i32
  }
  func.func @transform_3(%arg0: i32) -> (i32, i32) {
    %c0_i32 = arith.constant 0 : i32
    %c0_i32_0 = arith.constant 0 : i32
    %c0_i32_1 = arith.constant 0 : i32
    return %c0_i32, %c0_i32_0 : i32, i32
  }
  func.func @transform_4(%arg0: i32) -> (i32, i32) {
    %c0_i32 = arith.constant 0 : i32
    %c0_i32_0 = arith.constant 0 : i32
    return %arg0, %c0_i32 : i32, i32
  }
}

</mosaic_0001>

<llo_original>
// kernel: tpu_custom_call.1
$region0: #{tpu_custom_call.1}
  #allocation0 [shape = 'u32[]', space=smem, size = 0x4, offset = 0x4, fixed_abs, tag = 'smem constant byte address 0x4 - core index']
  #allocation1 [shape = 'u32[144,128]{1,0:T(1,128)}', space=vmem, size = 0x12000, scoped, tag = 'internal scratch']
  %s0 = inlined_call_operand.vmem [shape: f32[128,16], index: 0, kind: input, shape index: {}]
  %s1 = inlined_call_operand.vmem [shape: f32[1,16], index: 1, kind: input, shape index: {}]
  %s2 = inlined_call_operand.vmem [shape: f32[1,16], index: 2, kind: input, shape index: {}]
  %s3 = inlined_call_operand.vmem [shape: bf16[16,128], index: 3, kind: input, shape index: {}]
  %s4 = inlined_call_operand.hbm [shape: f32[128,128], index: 4, kind: output, shape index: {}]
  %s5 = sld [smem:[#allocation0]]
  $region26: #{tpu_custom_call.1} parent=0
    _
  %s7 = ssub.s32 1, %s5
  %s8 = scalar_select 0, %s7, %s5
  $region1: #{tpu_custom_call.1} parent=0
    #allocation2 [shape = 'u8[65536]{0}', space=vmem, size = 0x10000, scoped, tag = 'output window, operand 0, single buffered']
    #allocation3 [shape = 's32[1]{0}', space=sflag, size = 0x4, scoped, tag = 'scoped memory for tpu_custom_call.1']
    %9 = vsyncpa [#allocation3], 0
    // Predicated region
    $region2: #{tpu_custom_call.1} parent=1 // pred_check
      _
    $region3: #{tpu_custom_call.1} parent=1 // pred_check_branch
      %11 = sbr.rel (0) target = $region5
    $region4: #{tpu_custom_call.1} parent=1 // pred_region
      _
    $region5: #{tpu_custom_call.1} parent=1 // pred_fallthru
      _
    // Predicated region
    $region6: #{tpu_custom_call.1} parent=1 // pred_check
      _
    $region7: #{tpu_custom_call.1} parent=1 // pred_check_branch
      %13 = sbr.rel (0) target = $region9
    $region8: #{tpu_custom_call.1} parent=1 // pred_region
      _
    $region9: #{tpu_custom_call.1} parent=1 // pred_fallthru
      _
    // Predicated region
    $region10: #{tpu_custom_call.1} parent=1 // pred_check
      _
    $region11: #{tpu_custom_call.1} parent=1 // pred_check_branch
      %15 = sbr.rel (0) target = $region13
    $region12: #{tpu_custom_call.1} parent=1 // pred_region
      _
    $region13: #{tpu_custom_call.1} parent=1 // pred_fallthru
      _
    // Predicated region
    $region14: #{tpu_custom_call.1} parent=1 // pred_check
      _
    $region15: #{tpu_custom_call.1} parent=1 // pred_check_branch
      %17 = sbr.rel (0) target = $region17
    $region16: #{tpu_custom_call.1} parent=1 // pred_region
      _
    $region17: #{tpu_custom_call.1} parent=1 // pred_fallthru
      _
    %v19 = vld [vmem:[%s0] sm:$0xff]
    %v20 = vld [vmem:[%s0 + $0x8] sm:$0xff]
    %v21 = vld [vmem:[%s0 + $0x10] sm:$0xff]
    %v22 = vld [vmem:[%s0 + $0x18] sm:$0xff]
    %v23 = vld [vmem:[%s0 + $0x20] sm:$0xff]
    %v24 = vld [vmem:[%s0 + $0x28] sm:$0xff]
    %v25 = vld [vmem:[%s0 + $0x30] sm:$0xff]
    %v26 = vld [vmem:[%s0 + $0x38] sm:$0xff]
    %v27 = vld [vmem:[%s0 + $0x40] sm:$0xff]
    %v28 = vld [vmem:[%s0 + $0x48] sm:$0xff]
    %v29 = vld [vmem:[%s0 + $0x50] sm:$0xff]
    %v30 = vld [vmem:[%s0 + $0x58] sm:$0xff]
    %v31 = vld [vmem:[%s0 + $0x60] sm:$0xff]
    %v32 = vld [vmem:[%s0 + $0x68] sm:$0xff]
    %v33 = vld [vmem:[%s0 + $0x70] sm:$0xff]
    %v34 = vld [vmem:[%s0 + $0x78] sm:$0xff]
    %v35 = vld [vmem:[%s1] sm:$0x1]
    %v36 = vld [vmem:[%s2] sm:$0x1]
    %v38 = vlaneseq
    %v39 = vshrl.u32 %v38, 7
    %v40 = vsub.s32 0, %v39
    %v41 = vrot.slane %v35, %v40
    %v43 = vmul.f32 %v19, %v41
    %v44 = vmul.f32 %v20, %v41
    %v45 = vmul.f32 %v21, %v41
    %v46 = vmul.f32 %v22, %v41
    %v47 = vmul.f32 %v23, %v41
    %v48 = vmul.f32 %v24, %v41
    %v49 = vmul.f32 %v25, %v41
    %v50 = vmul.f32 %v26, %v41
    %v51 = vmul.f32 %v27, %v41
    %v52 = vmul.f32 %v28, %v41
    %v53 = vmul.f32 %v29, %v41
    %v54 = vmul.f32 %v30, %v41
    %v55 = vmul.f32 %v31, %v41
    %v56 = vmul.f32 %v32, %v41
    %v57 = vmul.f32 %v33, %v41
    %v58 = vmul.f32 %v34, %v41
    %v60 = vlaneseq
    %v61 = vshrl.u32 %v60, 7
    %v62 = vsub.s32 0, %v61
    %v63 = vrot.slane %v36, %v62
    %v65 = vadd.f32 %v43, %v63
    %v66 = vadd.f32 %v44, %v63
    %v67 = vadd.f32 %v45, %v63
    %v68 = vadd.f32 %v46, %v63
    %v69 = vadd.f32 %v47, %v63
    %v70 = vadd.f32 %v48, %v63
    %v71 = vadd.f32 %v49, %v63
    %v72 = vadd.f32 %v50, %v63
    %v73 = vadd.f32 %v51, %v63
    %v74 = vadd.f32 %v52, %v63
    %v75 = vadd.f32 %v53, %v63
    %v76 = vadd.f32 %v54, %v63
    %v77 = vadd.f32 %v55, %v63
    %v78 = vadd.f32 %v56, %v63
    %v79 = vadd.f32 %v57, %v63
    %v80 = vadd.f32 %v58, %v63
    %v81 = vmax.f32 %v65, 0.0
    %v82 = vmax.f32 %v66, 0.0
    %v83 = vmax.f32 %v67, 0.0
    %v84 = vmax.f32 %v68, 0.0
    %v85 = vmax.f32 %v69, 0.0
    %v86 = vmax.f32 %v70, 0.0
    %v87 = vmax.f32 %v71, 0.0
    %v88 = vmax.f32 %v72, 0.0
    %v89 = vmax.f32 %v73, 0.0
    %v90 = vmax.f32 %v74, 0.0
    %v91 = vmax.f32 %v75, 0.0
    %v92 = vmax.f32 %v76, 0.0
    %v93 = vmax.f32 %v77, 0.0
    %v94 = vmax.f32 %v78, 0.0
    %v95 = vmax.f32 %v79, 0.0
    %v96 = vmax.f32 %v80, 0.0
    %v97 = vpack.c.bf16 %v82, %v81
    %v98 = vpack.c.bf16 %v84, %v83
    %v99 = vpack.c.bf16 %v86, %v85
    %v100 = vpack.c.bf16 %v88, %v87
    %v101 = vpack.c.bf16 %v90, %v89
    %v102 = vpack.c.bf16 %v92, %v91
    %v103 = vpack.c.bf16 %v94, %v93
    %v104 = vpack.c.bf16 %v96, %v95
    %v105 = vld [vmem:[%s3] sm:$0xf]
    %v106 = vld [vmem:[%s3 + $0x4] sm:$0xf]
    %v109 = vunpack.c.l.b16 %v105
    %v110 = vunpack.c.l.b16 %v106
    %v111 = vpack.c.b16 %v110, %v109
    %vm113 = vcmask 130048
    %v115 = vsel %vm113, %v97, 0
    %v118 = vsel %vm113, %v98, 0
    %v121 = vsel %vm113, %v99, 0
    %v124 = vsel %vm113, %v100, 0
    %v127 = vsel %vm113, %v101, 0
    %v130 = vsel %vm113, %v102, 0
    %v133 = vsel %vm113, %v103, 0
    %v136 = vsel %vm113, %v104, 0
    %138 = vmatprep.subr.bf16.mxu0 0
    %139 = vmatpush1.bf16.msra.mxu0 0
    %140 = vmatprep.subr.bf16.mxu0 0
    %141 = vmatpush1.bf16.msra.mxu0 0
    %142 = vmatprep.subr.bf16.mxu0 0
    %143 = vmatpush1.bf16.msra.mxu0 0
    %144 = vmatprep.subr.bf16.mxu0 0
    %145 = vmatpush1.bf16.msra.mxu0 0
    %146 = vmatprep.subr.bf16.mxu0 0
    %147 = vmatpush1.bf16.msra.mxu0 0
    %148 = vmatprep.subr.bf16.mxu0 0
    %149 = vmatpush1.bf16.msra.mxu0 0
    %150 = vmatprep.subr.bf16.mxu0 0
    %151 = vmatpush1.bf16.msra.mxu0 0
    %152 = vmatprep.subr.bf16.mxu0 0
    %153 = vmatpush1.bf16.msra.mxu0 %v111
    %154 = vmatprep.subr.bf16.mxu0 0
    %155 = vmatpush2.bf16.msra.mxu0 0
    %156 = vmatprep.subr.bf16.mxu0 0
    %157 = vmatpush2.bf16.msra.mxu0 0
    %158 = vmatprep.subr.bf16.mxu0 0
    %159 = vmatpush2.bf16.msra.mxu0 0
    %160 = vmatprep.subr.bf16.mxu0 0
    %161 = vmatpush2.bf16.msra.mxu0 0
    %162 = vmatprep.subr.bf16.mxu0 0
    %163 = vmatpush2.bf16.msra.mxu0 0
    %164 = vmatprep.subr.bf16.mxu0 0
    %165 = vmatpush2.bf16.msra.mxu0 0
    %166 = vmatprep.subr.bf16.mxu0 0
    %167 = vmatpush2.bf16.msra.mxu0 0
    %168 = vmatprep.subr.bf16.mxu0 0
    %169 = vmatpush2.bf16.msra.mxu0 0
    %170 = vmatprep.mubr.bf16.mxu0 0
    %171 = vmatmul.mubr.bf16.gmra.mxu0 %v115
    %v172 = vpop.f32.mrf.mxu0
    %v173 = vadd.f32 0.0, %v172
    %v174 = vpop.f32.mrf.mxu0
    %v175 = vpop.f32.mrf.mxu0
    %v176 = vadd.f32 0.0, %v175
    %v177 = vpop.f32.mrf.mxu0
    %178 = vmatprep.mubr.bf16.mxu0 0
    %179 = vmatmul.mubr.bf16.gmra.mxu0 %v118
    %v180 = vpop.f32.mrf.mxu0
    %v181 = vadd.f32 0.0, %v180
    %v182 = vpop.f32.mrf.mxu0
    %v183 = vpop.f32.mrf.mxu0
    %v184 = vadd.f32 0.0, %v183
    %v185 = vpop.f32.mrf.mxu0
    %186 = vmatprep.mubr.bf16.mxu0 0
    %187 = vmatmul.mubr.bf16.gmra.mxu0 %v121
    %v188 = vpop.f32.mrf.mxu0
    %v189 = vadd.f32 0.0, %v188
    %v190 = vpop.f32.mrf.mxu0
    %v191 = vpop.f32.mrf.mxu0
    %v192 = vadd.f32 0.0, %v191
    %v193 = vpop.f32.mrf.mxu0
    %194 = vmatprep.mubr.bf16.mxu0 0
    %195 = vmatmul.mubr.bf16.gmra.mxu0 %v124
    %v196 = vpop.f32.mrf.mxu0
    %v197 = vadd.f32 0.0, %v196
    %v198 = vpop.f32.mrf.mxu0
    %v199 = vpop.f32.mrf.mxu0
    %v200 = vadd.f32 0.0, %v199
    %v201 = vpop.f32.mrf.mxu0
    %202 = vmatprep.mubr.bf16.mxu0 0
    %203 = vmatmul.mubr.bf16.gmra.mxu0 %v127
    %v204 = vpop.f32.mrf.mxu0
    %v205 = vadd.f32 0.0, %v204
    %v206 = vpop.f32.mrf.mxu0
    %v207 = vpop.f32.mrf.mxu0
    %v208 = vadd.f32 0.0, %v207
    %v209 = vpop.f32.mrf.mxu0
    %210 = vmatprep.mubr.bf16.mxu0 0
    %211 = vmatmul.mubr.bf16.gmra.mxu0 %v130
    %v212 = vpop.f32.mrf.mxu0
    %v213 = vadd.f32 0.0, %v212
    %v214 = vpop.f32.mrf.mxu0
    %v215 = vpop.f32.mrf.mxu0
    %v216 = vadd.f32 0.0, %v215
    %v217 = vpop.f32.mrf.mxu0
    %218 = vmatprep.mubr.bf16.mxu0 0
    %219 = vmatmul.mubr.bf16.gmra.mxu0 %v133
    %v220 = vpop.f32.mrf.mxu0
    %v221 = vadd.f32 0.0, %v220
    %v222 = vpop.f32.mrf.mxu0
    %v223 = vpop.f32.mrf.mxu0
    %v224 = vadd.f32 0.0, %v223
    %v225 = vpop.f32.mrf.mxu0
    %226 = vmatprep.mubr.bf16.mxu0 0
    %227 = vmatmul.mubr.bf16.gmra.mxu0 %v136
    %v228 = vpop.f32.mrf.mxu0
    %v229 = vadd.f32 0.0, %v228
    %v230 = vpop.f32.mrf.mxu0
    %v231 = vpop.f32.mrf.mxu0
    %v232 = vadd.f32 0.0, %v231
    %v233 = vpop.f32.mrf.mxu0
    %234 = vdwg.mxu0
    %235 = vst [vmem:[#allocation2] sm:$0xff] %v173
    %236 = vst [vmem:[#allocation2 + $0x8] sm:$0xff] %v176
    %237 = vst [vmem:[#allocation2 + $0x10] sm:$0xff] %v181
    %238 = vst [vmem:[#allocation2 + $0x18] sm:$0xff] %v184
    %239 = vst [vmem:[#allocation2 + $0x20] sm:$0xff] %v189
    %240 = vst [vmem:[#allocation2 + $0x28] sm:$0xff] %v192
    %241 = vst [vmem:[#allocation2 + $0x30] sm:$0xff] %v197
    %242 = vst [vmem:[#allocation2 + $0x38] sm:$0xff] %v200
    %243 = vst [vmem:[#allocation2 + $0x40] sm:$0xff] %v205
    %244 = vst [vmem:[#allocation2 + $0x48] sm:$0xff] %v208
    %245 = vst [vmem:[#allocation2 + $0x50] sm:$0xff] %v213
    %246 = vst [vmem:[#allocation2 + $0x58] sm:$0xff] %v216
    %247 = vst [vmem:[#allocation2 + $0x60] sm:$0xff] %v221
    %248 = vst [vmem:[#allocation2 + $0x68] sm:$0xff] %v224
    %249 = vst [vmem:[#allocation2 + $0x70] sm:$0xff] %v229
    %250 = vst [vmem:[#allocation2 + $0x78] sm:$0xff] %v232
    // Predicated region
    $region18: #{tpu_custom_call.1} parent=1 // pred_check
      _
    $region19: #{tpu_custom_call.1} parent=1 // pred_check_branch
      %252 = sbr.rel (0) target = $region21
    $region20: #{tpu_custom_call.1} parent=1 // pred_region
      %s254 = ssub.s32 2048, 2048
      %255 = vsyncadd [#allocation3], %s254
      %s256 = sshll.u32 [#allocation2], 4
      %s257 = int_to_ptr.vmem [resolvable:$true] %s256
      %262 = dma.vmem_to_hbm [thread:$0]  %s257, 2048, %s4, [#allocation3], 128, 128, 8
    $region21: #{tpu_custom_call.1} parent=1 // pred_fallthru
      _
    // Predicated region
    $region22: #{tpu_custom_call.1} parent=1 // pred_check
      _
    $region23: #{tpu_custom_call.1} parent=1 // pred_check_branch
      %264 = sbr.rel (0) target = $region25
    $region24: #{tpu_custom_call.1} parent=1 // pred_region
      %265 = dma.done [#allocation3], 2048
    $region25: #{tpu_custom_call.1} parent=1 // pred_fallthru
      _
    %266 = vsyncpa [#allocation3], 1

</llo_original>
